<compile_context>
chip_gen: v6e
topology: v6e:2x2x1
jax: 0.10.0
libtpu: 0.0.40
codegen_flags: <defaults>
</compile_context>

<pallas_src>
import jax
import jax.numpy as jnp
from jax.experimental import pallas as pl
from jax.experimental.pallas import tpu as pltpu


def _round_up(x: int, m: int) -> int:
    return (x + m - 1) // m * m


def ic2ner_kernel(scale_ref, x_ref, w_ref, b_ref, o_ref):
    # Dropout(p=0.25) is identity at inference time.
    # MXU matmul on the unscaled activation tile; f32 accumulate.
    y = jnp.dot(x_ref[...], w_ref[...], preferred_element_type=jnp.float32)
    # Post-matmul per-row scale + bias (mathematically == (x*s)@W + b).
    o_ref[...] = (scale_ref[...] * y + b_ref[...]).astype(o_ref.dtype)


def ic2ner_forward(ic_tokens, ner_tokens, weight_dn, bias_n, *, tm=512):
    """ic_tokens (B,S), ner_tokens (B,L,D), weight_dn (D,N), bias_n (N,) -> (B,L,N)."""
    B, S = ic_tokens.shape
    _, L, D = ner_tokens.shape
    N = weight_dn.shape[1]

    # Per-batch scalar mean computed once in the wrapper (cheap XLA reduce),
    # broadcast to a per-row scale column so flattened row tiles may span batches.
    means = jnp.mean(ic_tokens.astype(jnp.float32), axis=1)          # (B,)
    BL = B * L
    row_scale = jnp.repeat(means, L).reshape(BL, 1)                  # (BL, 1)
    x_flat = ner_tokens.reshape(BL, D).astype(jnp.float32)

    # Lane-dense output: pad num_labels up to a multiple of 128.
    N_pad = _round_up(N, 128)
    w_pad = jnp.zeros((D, N_pad), jnp.float32).at[:, :N].set(weight_dn.astype(jnp.float32))
    b_pad = jnp.zeros((1, N_pad), jnp.float32).at[0, :N].set(bias_n.astype(jnp.float32))

    # Collapse the batch/seq dims into large row tiles (multiple batches per step).
    TM = min(tm, _round_up(BL, 8))
    BL_pad = _round_up(BL, TM)
    if BL_pad != BL:
        x_flat = jnp.zeros((BL_pad, D), jnp.float32).at[:BL].set(x_flat)
        row_scale = jnp.zeros((BL_pad, 1), jnp.float32).at[:BL].set(row_scale)

    out_flat = pl.pallas_call(
        ic2ner_kernel,
        out_shape=jax.ShapeDtypeStruct((BL_pad, N_pad), jnp.float32),
        grid_spec=pltpu.PrefetchScalarGridSpec(
            num_scalar_prefetch=0,
            grid=(BL_pad // TM,),
            in_specs=[
                pl.BlockSpec((TM, 1), lambda i: (i, 0)),        # per-row scale column
                pl.BlockSpec((TM, D), lambda i: (i, 0)),        # activation row tile
                pl.BlockSpec((D, N_pad), lambda i: (0, 0)),     # weight (resident)
                pl.BlockSpec((1, N_pad), lambda i: (0, 0)),     # bias (resident)
            ],
            out_specs=pl.BlockSpec((TM, N_pad), lambda i: (i, 0)),
        ),
        compiler_params=pltpu.CompilerParams(
            dimension_semantics=("parallel",)),
    )(row_scale, x_flat, w_pad, b_pad)

    # Slice off row padding and label padding, restore (B, L, N).
    return out_flat[:BL, :N].reshape(B, L, N)


if __name__ == "__main__":
    key = jax.random.PRNGKey(0)
    B, S, L, D, N = 2, 8, 8, 32, 16   # batch, ic-seq, ner-seq, dim, num_labels_ner
    k1, k2, k3, k4 = jax.random.split(key, 4)

    ic_tokens = jax.random.normal(k1, (B, S), jnp.float32)
    ner_tokens = jax.random.normal(k2, (B, L, D), jnp.float32)

    # Deterministic param init mimicking torch.nn.Linear default: U(-1/sqrt(D), 1/sqrt(D)).
    bound = 1.0 / (D ** 0.5)
    w_pt = jax.random.uniform(k3, (N, D), jnp.float32, -bound, bound)  # torch weight (out, in)
    b_pt = jax.random.uniform(k4, (N,), jnp.float32, -bound, bound)

    out = ic2ner_forward(ic_tokens, ner_tokens, w_pt.T, b_pt)
    jax.block_until_ready(out)

    # Pure-JAX reference of the PyTorch forward (eval mode).
    s = jnp.mean(ic_tokens, axis=1, keepdims=True)[..., None]  # (B,1,1) per-batch scalar
    ref = (ner_tokens * s) @ w_pt.T + b_pt
    assert out.shape == (B, L, N)
    assert jnp.allclose(out, ref, atol=1e-5, rtol=1e-5)

    # TODO(synk): training-mode Dropout (p=0.25) not implemented; eval/inference semantics used.
    # TODO(synk): optional bf16 cast of activations/weights (v6e/v7x MXU) skipped to keep
    #             exact f32 parity with the PyTorch reference.
    print("KERNEL_OK")
</pallas_src>

<mosaic_0001>
module attributes {stable_mosaic.version = 11 : i64} {
  func.func @ic2ner_kernel(%arg0: i32, %arg1: memref<16x1xf32, #tpu.memory_space<vmem>>, %arg2: memref<16x32xf32, #tpu.memory_space<vmem>>, %arg3: memref<32x128xf32, #tpu.memory_space<vmem>>, %arg4: memref<1x128xf32, #tpu.memory_space<vmem>>, %arg5: memref<16x128xf32, #tpu.memory_space<vmem>>) attributes {dimension_semantics = [#tpu.dimension_semantics<parallel>], iteration_bounds = array<i64: 1>, scalar_prefetch = 0 : i64, scratch_operands = 0 : i64, tpu.core_type = #tpu.core_type<tc>, window_params = [{transform_indices = @transform_0, window_bounds = array<i64: 16, 1>}, {transform_indices = @transform_1, window_bounds = array<i64: 16, 32>}, {pipeline_mode = #tpu.pipeline_mode<synchronous>, transform_indices = @transform_2, window_bounds = array<i64: 32, 128>}, {pipeline_mode = #tpu.pipeline_mode<synchronous>, transform_indices = @transform_3, window_bounds = array<i64: 1, 128>}, {transform_indices = @transform_4, window_bounds = array<i64: 16, 128>}]} {
    %c0 = arith.constant 0 : index
    %c0_0 = arith.constant 0 : index
    %0 = vector.load %arg2[%c0, %c0_0] : memref<16x32xf32, #tpu.memory_space<vmem>>, vector<16x32xf32>
    %c0_1 = arith.constant 0 : index
    %c0_2 = arith.constant 0 : index
    %1 = vector.load %arg3[%c0_1, %c0_2] : memref<32x128xf32, #tpu.memory_space<vmem>>, vector<32x128xf32>
    %cst = arith.constant dense<0.000000e+00> : vector<16x128xf32>
    %2 = tpu.matmul %0, %1, %cst {dimension_numbers = #tpu.dot_dimension_numbers<[1], [0], [0], [1], [0, 0, 1, 1], [], []>} : vector<16x32xf32>, vector<32x128xf32>, vector<16x128xf32> -> vector<16x128xf32>
    %c0_3 = arith.constant 0 : index
    %c0_4 = arith.constant 0 : index
    %3 = vector.load %arg1[%c0_3, %c0_4] : memref<16x1xf32, #tpu.memory_space<vmem>>, vector<16x1xf32>
    %4 = vector.broadcast %3 : vector<16x1xf32> to vector<16x128xf32>
    %5 = arith.mulf %4, %2 : vector<16x128xf32>
    %c0_5 = arith.constant 0 : index
    %c0_6 = arith.constant 0 : index
    %6 = vector.load %arg4[%c0_5, %c0_6] : memref<1x128xf32, #tpu.memory_space<vmem>>, vector<1x128xf32>
    %7 = vector.broadcast %6 : vector<1x128xf32> to vector<16x128xf32>
    %8 = arith.addf %5, %7 : vector<16x128xf32>
    %c0_7 = arith.constant 0 : index
    %c0_8 = arith.constant 0 : index
    %9 = vector.load %arg5[%c0_7, %c0_8] : memref<16x128xf32, #tpu.memory_space<vmem>>, vector<16x128xf32>
    tpu.vector_store %arg5[%c0_7, %c0_8], %8 {strides = array<i32>} : memref<16x128xf32, #tpu.memory_space<vmem>>, vector<16x128xf32>,
    return
  }
  func.func @transform_0(%arg0: i32) -> (i32, i32) {
    %c0_i32 = arith.constant 0 : i32
    %c0_i32_0 = arith.constant 0 : i32
    return %arg0, %c0_i32 : i32, i32
  }
  func.func @transform_1(%arg0: i32) -> (i32, i32) {
    %c0_i32 = arith.constant 0 : i32
    %c0_i32_0 = arith.constant 0 : i32
    return %arg0, %c0_i32 : i32, i32
  }
  func.func @transform_2(%arg0: i32) -> (i32, i32) {
    %c0_i32 = arith.constant 0 : i32
    %c0_i32_0 = arith.constant 0 : i32
    %c0_i32_1 = arith.constant 0 : i32
    return %c0_i32, %c0_i32_0 : i32, i32
  }
  func.func @transform_3(%arg0: i32) -> (i32, i32) {
    %c0_i32 = arith.constant 0 : i32
    %c0_i32_0 = arith.constant 0 : i32
    %c0_i32_1 = arith.constant 0 : i32
    return %c0_i32, %c0_i32_0 : i32, i32
  }
  func.func @transform_4(%arg0: i32) -> (i32, i32) {
    %c0_i32 = arith.constant 0 : i32
    %c0_i32_0 = arith.constant 0 : i32
    return %arg0, %c0_i32 : i32, i32
  }
}

</mosaic_0001>

<llo_original>
// kernel: tpu_custom_call.1
$region0: #{tpu_custom_call.1}
  #allocation0 [shape = 'u32[]', space=smem, size = 0x4, offset = 0x4, fixed_abs, tag = 'smem constant byte address 0x4 - core index']
  #allocation1 [shape = 'u32[144,128]{1,0:T(1,128)}', space=vmem, size = 0x12000, scoped, tag = 'internal scratch']
  %s0 = inlined_call_operand.vmem [shape: f32[16,1], index: 0, kind: input, shape index: {}]
  %s1 = inlined_call_operand.vmem [shape: f32[16,32], index: 1, kind: input, shape index: {}]
  %s2 = inlined_call_operand.hbm [shape: f32[32,128], index: 2, kind: input, shape index: {}]
  %s3 = inlined_call_operand.vmem [shape: f32[1,128], index: 3, kind: input, shape index: {}]
  %s4 = inlined_call_operand.hbm [shape: f32[16,128], index: 4, kind: output, shape index: {}]
  %s5 = sld [smem:[#allocation0]]
  $region30: #{tpu_custom_call.1} parent=0
    _
  %s7 = ssub.s32 1, %s5
  %s8 = scalar_select 0, %s7, %s5
  $region1: #{tpu_custom_call.1} parent=0
    #allocation2 [shape = 'u8[16384]{0}', space=vmem, size = 0x4000, scoped, tag = 'input window, operand 2, single buffered']
    #allocation3 [shape = 's32[1]{0}', space=sflag, size = 0x4, scoped, tag = 'scoped memory for tpu_custom_call.1']
    #allocation4 [shape = 's32[1]{0}', space=sflag, size = 0x4, scoped, tag = 'scoped memory for tpu_custom_call.1']
    #allocation5 [shape = 'u8[8192]{0}', space=vmem, size = 0x2000, scoped, tag = 'output window, operand 0, single buffered']
    %9 = vsyncpa [#allocation3], 0
    %10 = vsyncpa [#allocation4], 0
    // Predicated region
    $region2: #{tpu_custom_call.1} parent=1 // pred_check
      _
    $region3: #{tpu_custom_call.1} parent=1 // pred_check_branch
      %12 = sbr.rel (0) target = $region5
    $region4: #{tpu_custom_call.1} parent=1 // pred_region
      _
    $region5: #{tpu_custom_call.1} parent=1 // pred_fallthru
      _
    // Predicated region
    $region6: #{tpu_custom_call.1} parent=1 // pred_check
      _
    $region7: #{tpu_custom_call.1} parent=1 // pred_check_branch
      %14 = sbr.rel (0) target = $region9
    $region8: #{tpu_custom_call.1} parent=1 // pred_region
      _
    $region9: #{tpu_custom_call.1} parent=1 // pred_fallthru
      _
    // Predicated region
    $region10: #{tpu_custom_call.1} parent=1 // pred_check
      _
    $region11: #{tpu_custom_call.1} parent=1 // pred_check_branch
      %16 = sbr.rel (0) target = $region13
    $region12: #{tpu_custom_call.1} parent=1 // pred_region
      %s18 = ssub.s32 512, 512
      %19 = vsyncadd [#allocation3], %s18
      %s20 = sshll.u32 [#allocation2], 4
      %s21 = int_to_ptr.vmem [resolvable:$true] %s20
      %26 = dma.hbm_to_vmem [thread:$0]  %s2, 512, %s21, [#allocation3], 128, 128, 8
    $region13: #{tpu_custom_call.1} parent=1 // pred_fallthru
      _
    // Predicated region
    $region14: #{tpu_custom_call.1} parent=1 // pred_check
      _
    $region15: #{tpu_custom_call.1} parent=1 // pred_check_branch
      %28 = sbr.rel (0) target = $region17
    $region16: #{tpu_custom_call.1} parent=1 // pred_region
      _
    $region17: #{tpu_custom_call.1} parent=1 // pred_fallthru
      _
    // Predicated region
    $region18: #{tpu_custom_call.1} parent=1 // pred_check
      _
    $region19: #{tpu_custom_call.1} parent=1 // pred_check_branch
      %30 = sbr.rel (0) target = $region21
    $region20: #{tpu_custom_call.1} parent=1 // pred_region
      %31 = dma.done [#allocation3], 512
    $region21: #{tpu_custom_call.1} parent=1 // pred_fallthru
      _
    %v32 = vld [vmem:[%s1] sm:$0xff]
    %v33 = vld [vmem:[%s1 + $0x8] sm:$0xff]
    %v34 = vld [vmem:[#allocation2] sm:$0xff]
    %v35 = vld [vmem:[#allocation2 + $0x8] sm:$0xff]
    %v36 = vld [vmem:[#allocation2 + $0x10] sm:$0xff]
    %v37 = vld [vmem:[#allocation2 + $0x18] sm:$0xff]
    %vm38 = vcmask 261120
    %v40 = vsel %vm38, %v32, 0
    %v43 = vsel %vm38, %v33, 0
    %45 = vmatprep.subr.mxu0 0.0
    %46 = vmatpush1.msra.mxu0 0.0
    %47 = vmatprep.subr.mxu0 0.0
    %48 = vmatpush1.msra.mxu0 0.0
    %49 = vmatprep.subr.mxu0 0.0
    %50 = vmatpush1.msra.mxu0 0.0
    %51 = vmatprep.subr.mxu0 0.0
    %52 = vmatpush1.msra.mxu0 0.0
    %53 = vmatprep.subr.mxu0 0.0
    %54 = vmatpush1.msra.mxu0 0.0
    %55 = vmatprep.subr.mxu0 0.0
    %56 = vmatpush1.msra.mxu0 0.0
    %57 = vmatprep.subr.mxu0 0.0
    %58 = vmatpush1.msra.mxu0 0.0
    %59 = vmatprep.subr.mxu0 0.0
    %60 = vmatpush1.msra.mxu0 0.0
    %61 = vmatprep.subr.mxu0 0.0
    %62 = vmatpush1.msra.mxu0 0.0
    %63 = vmatprep.subr.mxu0 0.0
    %64 = vmatpush1.msra.mxu0 0.0
    %65 = vmatprep.subr.mxu0 0.0
    %66 = vmatpush1.msra.mxu0 0.0
    %67 = vmatprep.subr.mxu0 0.0
    %68 = vmatpush1.msra.mxu0 0.0
    %69 = vmatprep.subr.mxu0 0.0
    %70 = vmatpush1.msra.mxu0 %v37
    %71 = vmatprep.subr.mxu0 0.0
    %72 = vmatpush1.msra.mxu0 %v36
    %73 = vmatprep.subr.mxu0 0.0
    %74 = vmatpush1.msra.mxu0 %v35
    %75 = vmatprep.subr.mxu0 0.0
    %76 = vmatpush1.msra.mxu0 %v34
    %77 = vmatprep.subr.mxu0 0.0
    %78 = vmatpush2.msra.mxu0 0.0
    %79 = vmatprep.subr.mxu0 0.0
    %80 = vmatpush2.msra.mxu0 0.0
    %81 = vmatprep.subr.mxu0 0.0
    %82 = vmatpush2.msra.mxu0 0.0
    %83 = vmatprep.subr.mxu0 0.0
    %84 = vmatpush2.msra.mxu0 0.0
    %85 = vmatprep.subr.mxu0 0.0
    %86 = vmatpush2.msra.mxu0 0.0
    %87 = vmatprep.subr.mxu0 0.0
    %88 = vmatpush2.msra.mxu0 0.0
    %89 = vmatprep.subr.mxu0 0.0
    %90 = vmatpush2.msra.mxu0 0.0
    %91 = vmatprep.subr.mxu0 0.0
    %92 = vmatpush2.msra.mxu0 0.0
    %93 = vmatprep.subr.mxu0 0.0
    %94 = vmatpush2.msra.mxu0 0.0
    %95 = vmatprep.subr.mxu0 0.0
    %96 = vmatpush2.msra.mxu0 0.0
    %97 = vmatprep.subr.mxu0 0.0
    %98 = vmatpush2.msra.mxu0 0.0
    %99 = vmatprep.subr.mxu0 0.0
    %100 = vmatpush2.msra.mxu0 0.0
    %101 = vmatprep.subr.mxu0 0.0
    %102 = vmatpush2.msra.mxu0 0.0
    %103 = vmatprep.subr.mxu0 0.0
    %104 = vmatpush2.msra.mxu0 0.0
    %105 = vmatprep.subr.mxu0 0.0
    %106 = vmatpush2.msra.mxu0 0.0
    %107 = vmatprep.subr.mxu0 0.0
    %108 = vmatpush2.msra.mxu0 0.0
    %109 = vmatprep.mubr.f32.mxu0 0.0
    %110 = vmatmul.mubr.f32.gmra.mxu0 %v40
    %v111 = vpop.f32.mrf.mxu0
    %v112 = vadd.f32 0.0, %v111
    %v113 = vpop.f32.mrf.mxu0
    %114 = vmatprep.mubr.f32.mxu0 0.0
    %115 = vmatmul.mubr.f32.gmra.mxu0 %v43
    %v116 = vpop.f32.mrf.mxu0
    %v117 = vadd.f32 0.0, %v116
    %v118 = vpop.f32.mrf.mxu0
    %119 = vdwg.mxu0
    %v120 = vld [vmem:[%s0] sm:$0xff]
    %v121 = vld [vmem:[%s0 + $0x8] sm:$0xff]
    %123 = vset.pattern.permute.xlu0 0
    %124 = vperm.xlu0 %123, %v120
    %v125 = vpop.permute.xlu0 %124
    %128 = vset.pattern.permute.xlu0 0
    %129 = vperm.xlu0 %128, %v121
    %v130 = vpop.permute.xlu0 %129
    %v132 = vmul.f32 %v125, %v112
    %v133 = vmul.f32 %v130, %v117
    %v134 = vld [vmem:[%s3] sm:$0x1]
    %v136 = vlaneseq
    %v137 = vshrl.u32 %v136, 7
    %v138 = vsub.s32 0, %v137
    %v139 = vrot.slane %v134, %v138
    %v141 = vadd.f32 %v132, %v139
    %v142 = vadd.f32 %v133, %v139
    %143 = vst [vmem:[#allocation5] sm:$0xff] %v141
    %144 = vst [vmem:[#allocation5 + $0x8] sm:$0xff] %v142
    // Predicated region
    $region22: #{tpu_custom_call.1} parent=1 // pred_check
      _
    $region23: #{tpu_custom_call.1} parent=1 // pred_check_branch
      %146 = sbr.rel (0) target = $region25
    $region24: #{tpu_custom_call.1} parent=1 // pred_region
      %s148 = ssub.s32 256, 256
      %149 = vsyncadd [#allocation4], %s148
      %s150 = sshll.u32 [#allocation5], 4
      %s151 = int_to_ptr.vmem [resolvable:$true] %s150
      %156 = dma.vmem_to_hbm [thread:$0]  %s151, 256, %s4, [#allocation4], 128, 128, 8
    $region25: #{tpu_custom_call.1} parent=1 // pred_fallthru
      _
    // Predicated region
    $region26: #{tpu_custom_call.1} parent=1 // pred_check
      _
    $region27: #{tpu_custom_call.1} parent=1 // pred_check_branch
      %158 = sbr.rel (0) target = $region29
    $region28: #{tpu_custom_call.1} parent=1 // pred_region
      %159 = dma.done [#allocation4], 256
    $region29: #{tpu_custom_call.1} parent=1 // pred_fallthru
      _
    %160 = vsyncpa [#allocation3], 1
    %161 = vsyncpa [#allocation4], 1

</llo_original>
